<compile_context>
chip_gen: v5e
topology: v5e:2x2
jax: 0.10.0
libtpu: 0.0.40
codegen_flags: <defaults>
</compile_context>

<pallas_src>
import functools
import math

import jax
import jax.numpy as jnp
from jax.experimental import pallas as pl
from jax.experimental.pallas import tpu as pltpu


# --------------------------------------------------------------------------- #
# Tile-size budgets
# --------------------------------------------------------------------------- #
_MAX_BLOCK_BYTES = 2 * 1024 * 1024    # row-sign path: ~8 MiB with in+out double-buffers
_FLAT_BLOCK_BYTES = 1 * 1024 * 1024   # flat-sign path (extra int32 intermediates)
_MAX_BLOCK_ROWS = 4096


def _align_down(v, a):
    return (v // a) * a


def _row_block(rows, lane, itemsize, row_align, budget):
    """Largest sublane-aligned row block that fits the per-block VMEM budget."""
    budget_rows = max(row_align, budget // max(1, lane * itemsize))
    br = max(row_align, min(_MAX_BLOCK_ROWS, _align_down(budget_rows, row_align)))
    return rows if br >= rows else br      # full extent is always a legal block dim


def _plan_case_a(R, S, itemsize, row_align, budget):
    """(R, S) layout with S % 128 == 0: pick a lane tile dividing S and a row block."""
    max_ts = min(S, _align_down(max(128, budget // (row_align * itemsize)), 128))
    tile_s = 128
    for cand in range(max_ts, 127, -128):
        if S % cand == 0:
            tile_s = cand
            break
    block_rows = _row_block(R, tile_s, itemsize, row_align, budget)
    # Keep >= 2 grid steps when possible so v7x's two TensorCores both get work.
    if pl.cdiv(R, block_rows) * (S // tile_s) == 1:
        if R >= 2 * row_align:
            block_rows = max(row_align, _align_down(R // 2, row_align))
        elif tile_s % 256 == 0:
            tile_s //= 2
    return block_rows, tile_s


def _plan_case_b(total, itemsize, row_align, budget):
    """Flat lane-dense layout: (total/L, L) with L a multiple-of-128 divisor of total."""
    max_l = min(total, _align_down(max(128, budget // (row_align * itemsize)), 128))
    lane = 128
    for cand in range(max_l, 127, -128):
        if total % cand == 0:
            lane = cand
            break
    rows = total // lane
    block_rows = _row_block(rows, lane, itemsize, row_align, budget)
    if pl.cdiv(rows, block_rows) == 1 and rows >= 2 * row_align:
        block_rows = max(row_align, _align_down(rows // 2, row_align))
    return rows, lane, block_rows


def _plan_case_c(R, S, itemsize, row_align, budget):
    """(R, S) fallback with full lane extent; row block clamped to the budget."""
    block_rows = _row_block(R, S, itemsize, row_align, budget)
    if pl.cdiv(R, block_rows) == 1 and R >= 2 * row_align:
        block_rows = max(row_align, _align_down(R // 2, row_align))
    return block_rows


# --------------------------------------------------------------------------- #
# bf16-native compute is only profitable/correct-fast on chips with bf16 VPU/EUP.
# --------------------------------------------------------------------------- #
@functools.lru_cache(maxsize=1)
def _supports_bf16_compute():
    try:
        kind = jax.devices()[0].device_kind.lower()
    except Exception:
        return False
    # v5e/v5p and older lack bf16 VPU/EUP; v6e / v7x and newer have them.
    return not any(tag in kind for tag in ("v2", "v3", "v4", "v5"))


# --------------------------------------------------------------------------- #
# Activation helpers (lower cleanly in Mosaic; dtype-preserving)
# --------------------------------------------------------------------------- #
def _sigmoid(x):
    # 0.5 * (tanh(x/2) + 1): a single EUP tanh, numerically stable.
    return 0.5 * (jnp.tanh(0.5 * x) + 1.0)


def _mish(x):
    # tanh(softplus(x)) == (e^{2x} + 2 e^x) / (e^{2x} + 2 e^x + 2)
    # -> one EUP exp + one approx reciprocal instead of exp + log1p + tanh.
    u = jnp.exp(jnp.minimum(x, 20.0))       # ratio saturates to 1 well before the clamp
    t = u * (u + 2.0)
    tf = t.astype(jnp.float32)
    ratio = (tf * pl.reciprocal(tf + 2.0, approx=True)).astype(x.dtype)
    return x * ratio


def _activation(x, act, lrelu_slope):
    if act == "relu":
        return jnp.maximum(x, 0.0)
    if act == "lrelu":
        return jnp.where(x >= 0.0, x, lrelu_slope * x)
    if act == "sigm":
        return _sigmoid(x)
    if act == "swish":
        return x * _sigmoid(x)
    if act == "mish":
        return _mish(x)
    raise ValueError(f"unsupported nonlinearity: {act!r}")


# --------------------------------------------------------------------------- #
# Kernel
# --------------------------------------------------------------------------- #
def _bipolar_kernel(x_ref, o_ref, *, num_channels, spatial, lane_width, flat_sign,
                    flip_input, flip_output, act, lrelu_slope, compute_dtype):
    br, bl = x_ref.shape
    x = x_ref[...].astype(compute_dtype)

    sign = None
    if flip_input or flip_output:
        i = pl.program_id(0)
        if flat_sign:
            # Per-element sign from the flat element index (lane-dense flat layout).
            # channel = (flat // S) % C; "channel is even" with vector remainders only:
            #   (flat % (C*S)) % (2*S) < S
            r = jax.lax.broadcasted_iota(jnp.int32, (br, bl), 0)
            c = jax.lax.broadcasted_iota(jnp.int32, (br, bl), 1)
            flat = (i * br + r) * lane_width + c
            even = ((flat % (num_channels * spatial)) % (2 * spatial)) < spatial
        else:
            # Rows are flattened (n, c) pairs -> per-row sign, broadcast across lanes.
            rows = jax.lax.broadcasted_iota(jnp.int32, (br, 1), 0) + i * br
            even = ((rows % num_channels) % 2) == 0
        sign = jnp.where(even, -1.0, 1.0).astype(compute_dtype)

    if flip_input:
        x = x * sign
    y = _activation(x, act, lrelu_slope)
    if flip_output:
        y = y * sign
    o_ref[...] = y.astype(o_ref.dtype)


# --------------------------------------------------------------------------- #
# Wrapper
# --------------------------------------------------------------------------- #
def bipolar(x, *, act="swish", flip_input=True, flip_output=True, lrelu_slope=0.01):
    """JAX/Pallas port of Bipolar(nonlinearity(act)).forward for NC... inputs."""
    N, C = x.shape[0], x.shape[1]
    S = math.prod(x.shape[2:]) if x.ndim > 2 else 1
    R = N * C
    total = R * S
    itemsize = jnp.dtype(x.dtype).itemsize
    row_align = max(8, 32 // max(1, itemsize))   # sublane packing: 8 f32 / 16 bf16 / 32 i8

    compute_dtype = (jnp.bfloat16
                     if (x.dtype == jnp.bfloat16 and _supports_bf16_compute())
                     else jnp.float32)

    if S >= 128 and S % 128 == 0:
        # Case A: lane-dense (N*C, S) layout, per-row sign.
        block_rows, tile_s = _plan_case_a(R, S, itemsize, row_align, _MAX_BLOCK_BYTES)
        x2d = x.reshape(R, S)
        grid = (pl.cdiv(R, block_rows), S // tile_s)
        spec = pl.BlockSpec((block_rows, tile_s), lambda i, j: (i, j))
        flat_sign, lane_width = False, S
    elif total % 128 == 0:
        # Case B: awkward S -> lane-dense flat (total/L, L) slab, per-element sign.
        rows, lane_width, block_rows = _plan_case_b(total, itemsize, row_align,
                                                    _FLAT_BLOCK_BYTES)
        x2d = x.reshape(rows, lane_width)
        grid = (pl.cdiv(rows, block_rows),)
        spec = pl.BlockSpec((block_rows, lane_width), lambda i: (i, 0))
        flat_sign = True
    else:
        # TODO(synk): total % 128 != 0 has no exact lane-dense reshape without a pad
        # pass; keep the (R, S) layout (lane-sparse stores for tiny S, but VMEM-capped
        # and no extra HBM pad/slice passes).
        block_rows = _plan_case_c(R, S, itemsize, row_align, _MAX_BLOCK_BYTES)
        x2d = x.reshape(R, S)
        grid = (pl.cdiv(R, block_rows),)
        spec = pl.BlockSpec((block_rows, S), lambda i: (i, 0))
        flat_sign, lane_width = False, S

    kernel = functools.partial(
        _bipolar_kernel,
        num_channels=C, spatial=S, lane_width=lane_width, flat_sign=flat_sign,
        flip_input=flip_input, flip_output=flip_output,
        act=act, lrelu_slope=lrelu_slope, compute_dtype=compute_dtype)

    out2d = pl.pallas_call(
        kernel,
        out_shape=jax.ShapeDtypeStruct(x2d.shape, x.dtype),
        grid_spec=pltpu.PrefetchScalarGridSpec(
            num_scalar_prefetch=0,
            grid=grid,
            in_specs=[spec],
            out_specs=spec,
        ),
        compiler_params=pltpu.CompilerParams(
            dimension_semantics=("parallel",) * len(grid)),
    )(x2d)

    return out2d.reshape(x.shape)


# --------------------------------------------------------------------------- #
# Pure-JAX reference mirroring the PyTorch module.
# --------------------------------------------------------------------------- #
def _reference(x, *, act="swish", flip_input=True, flip_output=True, lrelu_slope=0.01):
    C = x.shape[1]
    signs = jnp.where((jnp.arange(C) % 2) == 0, -1.0, 1.0).astype(jnp.float32)
    signs = signs.reshape((1, C) + (1,) * (x.ndim - 2))
    y = x.astype(jnp.float32)
    if flip_input:
        y = y * signs
    if act == "relu":
        y = jnp.maximum(y, 0.0)
    elif act == "lrelu":
        y = jnp.where(y >= 0.0, y, lrelu_slope * y)
    elif act == "sigm":
        y = jax.nn.sigmoid(y)
    elif act == "swish":
        y = y * jax.nn.sigmoid(y)
    elif act == "mish":
        y = y * jnp.tanh(jax.nn.softplus(y))
    else:
        raise ValueError(act)
    if flip_output:
        y = y * signs
    return y.astype(x.dtype)


def _check(x, tol=1e-5, **kw):
    out = jax.block_until_ready(jax.jit(functools.partial(bipolar, **kw))(x))
    ref = _reference(x, **kw)
    assert out.shape == x.shape and out.dtype == x.dtype, (out.shape, out.dtype)
    err = float(jnp.max(jnp.abs(out.astype(jnp.float32) - ref.astype(jnp.float32))))
    assert jnp.allclose(out.astype(jnp.float32), ref.astype(jnp.float32),
                        atol=tol, rtol=tol), (kw, x.shape, err)


if __name__ == "__main__":
    key = jax.random.PRNGKey(0)

    # Case A: lane-dense (N*C, S) layout (S = 256).
    x = jax.random.normal(key, (2, 4, 16, 16), dtype=jnp.float32)
    for a in ("swish", "relu", "lrelu", "sigm"):
        _check(x, act=a)
    _check(x, act="mish", tol=2e-2)              # mish uses an approximate reciprocal
    _check(x, act="swish", flip_output=False)    # flip_input-only variant

    # Case A with a ragged last row block (R=40, block_rows=16): no pad, no slice.
    _check(jax.random.normal(key, (10, 4, 8, 16), dtype=jnp.float32), act="swish")

    # Case B: awkward spatial -> lane-dense flat layout with per-element sign.
    _check(jax.random.normal(key, (4, 32, 3, 3), dtype=jnp.float32), act="swish")  # S=9
    _check(jax.random.normal(key, (8, 3, 4, 4), dtype=jnp.float32), act="swish")   # odd C
    _check(jax.random.normal(key, (2, 64), dtype=jnp.float32), act="swish")        # S=1

    # Case C fallback: total not divisible by 128.
    _check(jax.random.normal(key, (2, 3, 4, 4), dtype=jnp.float32), act="swish")

    # bf16 path: bf16-native compute on v6e/v7x, f32 compute on older chips.
    _check(x.astype(jnp.bfloat16), act="swish", tol=5e-2)

    print("KERNEL_OK")
</pallas_src>

<mosaic_0001>
module attributes {stable_mosaic.version = 11 : i64} {
  func.func @_bipolar_kernel(%arg0: i32, %arg1: i32, %arg2: memref<8x128xf32, #tpu.memory_space<vmem>>, %arg3: memref<8x128xf32, #tpu.memory_space<vmem>>) attributes {dimension_semantics = [#tpu.dimension_semantics<parallel>, #tpu.dimension_semantics<parallel>], iteration_bounds = array<i64: 1, 2>, scalar_prefetch = 0 : i64, scratch_operands = 0 : i64, tpu.core_type = #tpu.core_type<tc>, window_params = [{transform_indices = @transform_0, window_bounds = array<i64: 8, 128>}, {transform_indices = @transform_1, window_bounds = array<i64: 8, 128>}]} {
    %c0 = arith.constant 0 : index
    %c0_0 = arith.constant 0 : index
    %0 = vector.load %arg2[%c0, %c0_0] : memref<8x128xf32, #tpu.memory_space<vmem>>, vector<8x128xf32>
    %1 = tpu.iota {dimensions = array<i32: 0>} : vector<8x1xi32>
    %c8_i32 = arith.constant 8 : i32
    %2 = arith.muli %arg0, %c8_i32 : i32
    %3 = vector.broadcast %2 : i32 to vector<8x1xi32>
    %4 = arith.addi %1, %3 : vector<8x1xi32>
    %c4_i32 = arith.constant 4 : i32
    %c0_i32 = arith.constant 0 : i32
    %5 = arith.cmpi eq, %c4_i32, %c0_i32 : i32
    %c1_i32 = arith.constant 1 : i32
    %6 = arith.select %5, %c1_i32, %c4_i32 : i32
    %7 = vector.broadcast %6 : i32 to vector<8x1xi32>
    %8 = arith.remsi %4, %7 : vector<8x1xi32>
    %c0_i32_1 = arith.constant 0 : i32
    %9 = vector.broadcast %c0_i32_1 : i32 to vector<8x1xi32>
    %10 = arith.cmpi ne, %8, %9 : vector<8x1xi32>
    %c0_i32_2 = arith.constant 0 : i32
    %11 = vector.broadcast %c0_i32_2 : i32 to vector<8x1xi32>
    %12 = arith.cmpi slt, %8, %11 : vector<8x1xi32>
    %c0_i32_3 = arith.constant 0 : i32
    %13 = arith.cmpi slt, %6, %c0_i32_3 : i32
    %14 = vector.broadcast %13 : i1 to vector<8x1xi1>
    %15 = vector.broadcast %14 : vector<8x1xi1> to vector<8x1xi1>
    %16 = arith.xori %12, %15 : vector<8x1xi1>
    %17 = arith.andi %16, %10 : vector<8x1xi1>
    %18 = vector.broadcast %6 : i32 to vector<8x1xi32>
    %19 = arith.addi %8, %18 : vector<8x1xi32>
    %20 = arith.select %17, %19, %8 : vector<8x1xi1>, vector<8x1xi32>
    %c2_i32 = arith.constant 2 : i32
    %c0_i32_4 = arith.constant 0 : i32
    %21 = arith.cmpi eq, %c2_i32, %c0_i32_4 : i32
    %c1_i32_5 = arith.constant 1 : i32
    %22 = arith.select %21, %c1_i32_5, %c2_i32 : i32
    %23 = vector.broadcast %22 : i32 to vector<8x1xi32>
    %24 = arith.remsi %20, %23 : vector<8x1xi32>
    %c0_i32_6 = arith.constant 0 : i32
    %25 = vector.broadcast %c0_i32_6 : i32 to vector<8x1xi32>
    %26 = arith.cmpi ne, %24, %25 : vector<8x1xi32>
    %c0_i32_7 = arith.constant 0 : i32
    %27 = vector.broadcast %c0_i32_7 : i32 to vector<8x1xi32>
    %28 = arith.cmpi slt, %24, %27 : vector<8x1xi32>
    %c0_i32_8 = arith.constant 0 : i32
    %29 = arith.cmpi slt, %22, %c0_i32_8 : i32
    %30 = vector.broadcast %29 : i1 to vector<8x1xi1>
    %31 = vector.broadcast %30 : vector<8x1xi1> to vector<8x1xi1>
    %32 = arith.xori %28, %31 : vector<8x1xi1>
    %33 = arith.andi %32, %26 : vector<8x1xi1>
    %34 = vector.broadcast %22 : i32 to vector<8x1xi32>
    %35 = arith.addi %24, %34 : vector<8x1xi32>
    %36 = arith.select %33, %35, %24 : vector<8x1xi1>, vector<8x1xi32>
    %c0_i32_9 = arith.constant 0 : i32
    %37 = vector.broadcast %c0_i32_9 : i32 to vector<8x1xi32>
    %38 = arith.cmpi eq, %36, %37 : vector<8x1xi32>
    %cst = arith.constant -1.000000e+00 : f32
    %cst_10 = arith.constant 1.000000e+00 : f32
    %39 = vector.broadcast %cst : f32 to vector<8x1xf32>
    %40 = vector.broadcast %cst_10 : f32 to vector<8x1xf32>
    %41 = arith.select %38, %39, %40 : vector<8x1xi1>, vector<8x1xf32>
    %42 = vector.broadcast %41 : vector<8x1xf32> to vector<8x128xf32>
    %43 = arith.mulf %0, %42 : vector<8x128xf32>
    %cst_11 = arith.constant 5.000000e-01 : f32
    %44 = vector.broadcast %cst_11 : f32 to vector<8x128xf32>
    %45 = arith.mulf %44, %43 : vector<8x128xf32>
    %46 = math.tanh %45 : vector<8x128xf32>
    %cst_12 = arith.constant 1.000000e+00 : f32
    %47 = vector.broadcast %cst_12 : f32 to vector<8x128xf32>
    %48 = arith.addf %46, %47 : vector<8x128xf32>
    %cst_13 = arith.constant 5.000000e-01 : f32
    %49 = vector.broadcast %cst_13 : f32 to vector<8x128xf32>
    %50 = arith.mulf %49, %48 : vector<8x128xf32>
    %51 = arith.mulf %43, %50 : vector<8x128xf32>
    %52 = vector.broadcast %41 : vector<8x1xf32> to vector<8x128xf32>
    %53 = arith.mulf %51, %52 : vector<8x128xf32>
    %c0_14 = arith.constant 0 : index
    %c0_15 = arith.constant 0 : index
    %54 = vector.load %arg3[%c0_14, %c0_15] : memref<8x128xf32, #tpu.memory_space<vmem>>, vector<8x128xf32>
    tpu.vector_store %arg3[%c0_14, %c0_15], %53 {strides = array<i32>} : memref<8x128xf32, #tpu.memory_space<vmem>>, vector<8x128xf32>,
    return
  }
  func.func @transform_0(%arg0: i32, %arg1: i32) -> (i32, i32) {
    %c0_i32 = arith.constant 0 : i32
    return %arg0, %arg1 : i32, i32
  }
  func.func @transform_1(%arg0: i32, %arg1: i32) -> (i32, i32) {
    %c0_i32 = arith.constant 0 : i32
    return %arg0, %arg1 : i32, i32
  }
}

</mosaic_0001>

<llo_original>
// kernel: bipolar.1
$region0: #{bipolar.1}
  #allocation0 [shape = 'u32[]', space=smem, size = 0x4, offset = 0x4, fixed_abs, tag = 'smem constant byte address 0x4 - core index']
  #allocation1 [shape = 'u32[72,128]{1,0:T(1,128)}', space=vmem, size = 0x9000, scoped, tag = 'internal scratch']
  %s0 = inlined_call_operand.vmem [shape: f32[8,256], index: 0, kind: input, shape index: {}]
  %s1 = inlined_call_operand.vmem [shape: f32[8,256], index: 1, kind: output, shape index: {}]
  %s2 = sld [smem:[#allocation0]]
  $region37: #{bipolar.1} parent=0
    _
  %s4 = ssub.s32 1, %s2
  %s5 = scalar_select 0, %s4, %s2
  loop: start=0, step=1, limit=4
  $region2: #{bipolar.1} parent=0 // loop_pre_header
    _
  $region3: #{bipolar.1} parent=0 // loop_header
    %s7 = sphi 0, %s11
    %p8 = scmp.ge.s32.totalorder %s7, 4
    %s14 = sphi 0, %s26
    %s15 = sphi 0, %s22
    %s16 = sphi 0, %s14
    %s17 = sphi 0, %s15
    %s18 = sphi 0, %s16
    %s19 = sphi 0, %s17
    %s31 = sphi 0, %s33
    %s34 = sphi 0, %s31
    %s35 = sphi 0, %s34
    %s51 = sphi 0, %s35
    %s59 = sphi 0, %s61
    %s62 = sphi 0, %s59
    %s63 = sphi 0, %s62
    %s79 = sphi 0, %s63
  $region4: #{bipolar.1} parent=0 // loop_header_branch
    %10 = sbr.rel (%p8) target = $region8
  $region5: #{bipolar.1} parent=0 // loop_body
    %s12 = ssub.s32 %s7, 1
    %s13 = ssub.s32 %s7, 2
    %s20 = sadd.s32 1, %s15
    %p21 = scmp.ge.s32.totalorder %s20, 2
    %s22 = scalar_select %p21, 0, %s20
    %s23 = sadd.s32 1, %s14
    %s24 = scalar_select %p21, %s23, %s14
    %p25 = scmp.ge.s32.totalorder %s24, 1
    %s26 = scalar_select %p25, 0, %s24
    %s27 = ssub.s32 %s14, %s26
    %s28 = ssub.s32 %s15, %s22
    %s29 = sor.u32 %s27, %s28
    %p30 = scmp.eq.s32.totalorder %s29, 0
    %s32 = sadd.s32 %s31, 1
    %s33 = scalar_select %p30, %s31, %s32
    %p36 = pneg %p30
    %p37 = scmp.eq.s32.totalorder %s7, 1
    %p38 = por %p36, %p37
    %p39 = scmp.ne.s32.totalorder %s31, %s34
    %p40 = scmp.eq.s32.totalorder %s7, 0
    %p41 = por %p39, %p40
    %p42 = scmp.ne.s32.totalorder %s31, %s34
    %p43 = scmp.eq.s32.totalorder %s12, 1
    %p44 = por %p42, %p43
    %p45 = scmp.ne.s32.totalorder %s34, %s35
    %p46 = scmp.eq.s32.totalorder %s12, 0
    %p47 = por %p45, %p46
    %p48 = scmp.ne.s32.totalorder %s34, %s35
    %p49 = scmp.eq.s32.totalorder %s13, 1
    %p50 = por %p48, %p49
    %p52 = scmp.ne.s32.totalorder %s35, %s51
    %p53 = scmp.eq.s32.totalorder %s13, 0
    %p54 = por %p52, %p53
    %s55 = ssub.s32 %s14, %s26
    %s56 = ssub.s32 %s15, %s22
    %s57 = sor.u32 %s55, %s56
    %p58 = scmp.eq.s32.totalorder %s57, 0
    %s60 = sadd.s32 %s59, 1
    %s61 = scalar_select %p58, %s59, %s60
    %p64 = pneg %p58
    %p65 = scmp.eq.s32.totalorder %s7, 1
    %p66 = por %p64, %p65
    %p67 = scmp.ne.s32.totalorder %s59, %s62
    %p68 = scmp.eq.s32.totalorder %s7, 0
    %p69 = por %p67, %p68
    %p70 = scmp.ne.s32.totalorder %s59, %s62
    %p71 = scmp.eq.s32.totalorder %s12, 1
    %p72 = por %p70, %p71
    %p73 = scmp.ne.s32.totalorder %s62, %s63
    %p74 = scmp.eq.s32.totalorder %s12, 0
    %p75 = por %p73, %p74
    %p76 = scmp.ne.s32.totalorder %s62, %s63
    %p77 = scmp.eq.s32.totalorder %s13, 1
    %p78 = por %p76, %p77
    %p80 = scmp.ne.s32.totalorder %s63, %s79
    %p81 = scmp.eq.s32.totalorder %s13, 0
    %p82 = por %p80, %p81
    %p83 = scmp.le.s32.totalorder 1, %s7
    %p84 = scmp.lt.s32.totalorder %s7, 3
    %p85 = pnand %p83, %p84
    %p86 = pneg %p85
    // Predicated region
    $region9: #{bipolar.1} parent=5 // pred_check
      _
    $region10: #{bipolar.1} parent=5 // pred_check_branch
      %88 = sbr.rel (%p85) target = $region12
    $region11: #{bipolar.1} parent=5 // pred_region
      %s89 = ssub.s32 %s7, 1
    $region12: #{bipolar.1} parent=5 // pred_fallthru
      _
    %p90 = scmp.lt.s32.totalorder %s7, 2
    // Predicated region
    $region13: #{bipolar.1} parent=5 // pred_check
      %p91 = pneg %p90
    $region14: #{bipolar.1} parent=5 // pred_check_branch
      %93 = sbr.rel (%p91) target = $region16
    $region15: #{bipolar.1} parent=5 // pred_region
      // Predicated region
      $region17: #{bipolar.1} parent=15 // pred_check
        %p94 = pneg %p41
      $region18: #{bipolar.1} parent=15 // pred_check_branch
        %96 = sbr.rel (%p94) target = $region20
      $region19: #{bipolar.1} parent=15 // pred_region
        %p97 = scmp.lt.s32.totalorder %s14, 0
        %s98 = scalar_select %p97, %s14, 0
        %p99 = scmp.lt.s32.totalorder %s15, 1
        %s100 = scalar_select %p99, %s15, 1
        %s101 = smul.addr %s98, 2
        %s102 = sadd.s32 %s100, %s101
        %s103 = smul.addr %s102, 8
        %s104 = scalar_lea.vmem %s0, %s103
      $region20: #{bipolar.1} parent=15 // pred_fallthru
        _
    $region16: #{bipolar.1} parent=5 // pred_fallthru
      _
    %p105 = scmp.le.s32.totalorder 1, %s7
    %p106 = scmp.lt.s32.totalorder %s7, 3
    %p107 = pnand %p105, %p106
    %p108 = pneg %p107
    // Predicated region
    $region21: #{bipolar.1} parent=5 // pred_check
      _
    $region22: #{bipolar.1} parent=5 // pred_check_branch
      %110 = sbr.rel (%p107) target = $region24
    $region23: #{bipolar.1} parent=5 // pred_region
      %s111 = ssub.s32 %s7, 1
      %p112 = scmp.lt.s32.totalorder %s16, 0
      %s113 = scalar_select %p112, %s16, 0
      %p114 = scmp.lt.s32.totalorder %s17, 1
      %s115 = scalar_select %p114, %s17, 1
      %s116 = smul.addr %s113, 2
      %s117 = sadd.s32 %s115, %s116
      %s118 = smul.addr %s117, 8
      %s119 = scalar_lea.vmem %s0, %s118
      %p120 = pneg %p47
      %p121 = pneg %p44
      %p122 = pneg %p75
      %p123 = pneg %p72
      %p124 = scmp.lt.s32.totalorder %s16, 0
      %s125 = scalar_select %p124, %s16, 0
      %p126 = scmp.lt.s32.totalorder %s17, 1
      %s127 = scalar_select %p126, %s17, 1
      %s128 = smul.addr %s125, 2
      %s129 = sadd.s32 %s127, %s128
      %s130 = smul.addr %s129, 8
      %s131 = scalar_lea.vmem %s1, %s130
      %p132 = scmp.lt.s32.totalorder %s16, 0
      %s133 = scalar_select %p132, %s16, 0
      %p134 = scmp.lt.s32.totalorder %s17, 1
      %s135 = scalar_select %p134, %s17, 1
      %s136 = smul.addr %s133, 2
      %s137 = sadd.s32 %s135, %s136
      %s138 = smul.addr %s137, 8
      %s139 = scalar_lea.vmem %s0, %s138
      %p140 = scmp.lt.s32.totalorder %s16, 0
      %s141 = scalar_select %p140, %s16, 0
      %p142 = scmp.lt.s32.totalorder %s17, 1
      %s143 = scalar_select %p142, %s17, 1
      %s144 = smul.addr %s141, 2
      %s145 = sadd.s32 %s143, %s144
      %s146 = smul.addr %s145, 8
      %s147 = scalar_lea.vmem %s1, %s146
      %v148 = vld [vmem:[%s139] sm:$0xff]
      %v149 = vlaneseq
      %v150 = vshrl.u32 %v149, 7
      %s151 = smul.u32 %s16, 8
      %v152 = vstv %s151
      %v153 = vadd.s32 %v150, %v152
      %vm154 = vcmp.lt.s32.totalorder %v153, 0
      %v155 = vsub.s32 0, %v153
      %v156 = vsel %vm154, %v155, %v153
      %v157 = vshrl.u32 %v156, 2
      %v158 = vand.u32 %v156, 3
      %v159 = vsub.s32 0, %v158
      %v160 = vsel %vm154, %v159, %v158
      %vm161 = vcmp.ne.s32.totalorder %v160, 0
      %vm162 = vcmp.lt.s32.totalorder %v160, 0
      %vm163 = vmand %vm162, %vm161
      %v164 = vadd.s32 %v160, 4
      %v165 = vsel %vm163, %v164, %v160
      %vm166 = vcmp.lt.s32.totalorder %v165, 0
      %v167 = vsub.s32 0, %v165
      %v168 = vsel %vm166, %v167, %v165
      %v169 = vshrl.u32 %v168, 1
      %v170 = vand.u32 %v168, 1
      %v171 = vsub.s32 0, %v170
      %v172 = vsel %vm166, %v171, %v170
      %vm173 = vcmp.ne.s32.totalorder %v172, 0
      %vm174 = vcmp.lt.s32.totalorder %v172, 0
      %vm175 = vmand %vm174, %vm173
      %v176 = vadd.s32 %v172, 2
      %v177 = vsel %vm175, %v176, %v172
      %vm178 = vcmp.eq.s32.totalorder %v177, 0
      %v179 = vsel %vm178, -1.0, 1.0
      %v180 = vmul.f32 %v148, %v179
      %v181 = vmul.f32 %v180, 0.5
      %v182 = vtanh.pop %v181
      %v183 = vadd.f32 %v182, 1.0
      %v184 = vmul.f32 %v183, 0.5
      %v185 = vmul.f32 %v180, %v184
      %v186 = vmul.f32 %v185, %v179
      %187 = vst [vmem:[%s147] sm:$0xff] %v186
      %p188 = scmp.lt.s32.totalorder %s16, 0
      %s189 = scalar_select %p188, %s16, 0
      %p190 = scmp.lt.s32.totalorder %s17, 1
      %s191 = scalar_select %p190, %s17, 1
      %s192 = smul.addr %s189, 2
      %s193 = sadd.s32 %s191, %s192
      %s194 = smul.addr %s193, 8
      %s195 = scalar_lea.vmem %s1, %s194
      // Predicated region
      $region25: #{bipolar.1} parent=23 // pred_check
        %p196 = pneg %p72
      $region26: #{bipolar.1} parent=23 // pred_check_branch
        %198 = sbr.rel (%p196) target = $region28
      $region27: #{bipolar.1} parent=23 // pred_region
        _
      $region28: #{bipolar.1} parent=23 // pred_fallthru
        _
    $region24: #{bipolar.1} parent=5 // pred_fallthru
      _
    %p199 = scmp.le.s32.totalorder 2, %s7
    // Predicated region
    $region29: #{bipolar.1} parent=5 // pred_check
      %p200 = pneg %p199
    $region30: #{bipolar.1} parent=5 // pred_check_branch
      %202 = sbr.rel (%p200) target = $region32
    $region31: #{bipolar.1} parent=5 // pred_region
      %s203 = ssub.s32 %s7, 2
      // Predicated region
      $region33: #{bipolar.1} parent=31 // pred_check
        %p204 = pneg %p78
      $region34: #{bipolar.1} parent=31 // pred_check_branch
        %206 = sbr.rel (%p204) target = $region36
      $region35: #{bipolar.1} parent=31 // pred_region
        %p207 = scmp.lt.s32.totalorder %s18, 0
        %s208 = scalar_select %p207, %s18, 0
        %p209 = scmp.lt.s32.totalorder %s19, 1
        %s210 = scalar_select %p209, %s19, 1
        %s211 = smul.addr %s208, 2
        %s212 = sadd.s32 %s210, %s211
        %s213 = smul.addr %s212, 8
        %s214 = scalar_lea.vmem %s1, %s213
      $region36: #{bipolar.1} parent=31 // pred_fallthru
        _
    $region32: #{bipolar.1} parent=5 // pred_fallthru
      _
  $region6: #{bipolar.1} parent=0 // loop_footer
    %s11 = sadd.s32 1, %s7
  $region7: #{bipolar.1} parent=0 // loop_footer_branch
    %6 = sbr.rel target = $region3
  $region8: #{bipolar.1} parent=0 // loop_exit
    _

</llo_original>
